<compile_context>
chip_gen: v7x
topology: tpu7x:2x2x1
jax: 0.10.0
libtpu: 0.0.40
codegen_flags: <defaults>
</compile_context>

<pallas_src>
import functools

import jax
import jax.numpy as jnp
from jax.experimental import pallas as pl
from jax.experimental.pallas import tpu as pltpu

IN_FEATURES = 784
HIDDEN = 256
OUT_FEATURES = 10
OUT_PAD = 128      # lane-dense padded output width (>= OUT_FEATURES)
MAX_TILE = 4096    # v7x-safe cap (64 MiB physical VMEM / 32 MiB scoped default)


def _round_up(n, m):
    return ((n + m - 1) // m) * m


def _cdiv(a, b):
    return -(-a // b)


def mlp_kernel(x_ref, w1_ref, b1_ref, w2_ref, b2_ref, o_ref):
    # Fused f32 -> bf16 cast of the activations (VPU); avoids a separate XLA
    # pass over x in HBM on this bandwidth-bound kernel.
    x = x_ref[...].astype(jnp.bfloat16)
    # fc1 on the MXU, f32 accumulation.
    h = jnp.dot(x, w1_ref[...], preferred_element_type=jnp.float32)
    # Bias add + ReLU in f32 on the VPU (v5e has no bf16 VPU/EUP).
    h = jnp.maximum(h + b1_ref[...], 0.0)
    # fc2: bf16 operands, f32 accumulation. Output block is a full 128-lane
    # slab (zero-padded columns) so the in-kernel store is an unmasked vst.
    out = jnp.dot(h.astype(jnp.bfloat16), w2_ref[...],
                  preferred_element_type=jnp.float32)
    o_ref[...] = (out + b2_ref[...]).astype(o_ref.dtype)


def prepare_params(w1, b1, w2, b2):
    """One-time parameter prep (hoisted out of the per-call path).

    PyTorch Linear stores W as (out, in); pre-transpose so the kernel does
    plain row-major matmuls, cast matmul operands to bf16, and zero-pad fc2
    to a full 128-lane output slab.
    """
    w1_t = jnp.asarray(w1).T.astype(jnp.bfloat16)                     # (784, 256)
    b1_2d = jnp.asarray(b1).reshape(1, HIDDEN).astype(jnp.float32)    # (1, 256)
    w2_pad = jnp.zeros((HIDDEN, OUT_PAD), jnp.bfloat16)
    w2_pad = w2_pad.at[:, :OUT_FEATURES].set(
        jnp.asarray(w2).T.astype(jnp.bfloat16))                       # (256, 128)
    b2_pad = jnp.zeros((1, OUT_PAD), jnp.float32)
    b2_pad = b2_pad.at[:, :OUT_FEATURES].set(
        jnp.asarray(b2).astype(jnp.float32))                          # (1, 128)
    return w1_t, b1_2d, w2_pad, b2_pad


@functools.partial(jax.jit, static_argnames=("tile_n",))
def relax_model_forward(x, w1_t, b1_2d, w2_pad, b2_pad, tile_n=2048):
    """x: (N, 784) f32; params from prepare_params. Returns (N, 10) f32."""
    n = x.shape[0]

    # Tile selection:
    #  * capped by tile_n and a v7x-safe maximum,
    #  * sized so the batch axis yields >= 2 grid steps when possible
    #    (megacore sharding on v7x's two TensorCores),
    #  * multiple of 16 rows (bf16 packs 16 rows per sublane-packed vreg).
    tile = min(min(tile_n, MAX_TILE), _round_up(_cdiv(max(n, 1), 2), 16))
    grid = (_cdiv(n, tile),)   # partial last block is masked by Pallas

    # Explicit VMEM budget: double-buffered f32 x tiles + bf16 out tiles,
    # (double-buffered) resident weights/biases, in-kernel temporaries,
    # plus headroom. Sized so tile<=MAX_TILE stays inside v7x's 64 MiB VMEM.
    vmem_bytes = int(
        2 * tile * IN_FEATURES * 4                                  # x tiles (f32)
        + 2 * tile * OUT_PAD * 2                                    # out tiles (bf16)
        + 2 * (IN_FEATURES * HIDDEN * 2 + HIDDEN * OUT_PAD * 2)     # weights (bf16)
        + 2 * 2 * (HIDDEN + OUT_PAD) * 4                            # biases (f32)
        + tile * (IN_FEATURES * 2                                   # bf16 copy of x
                  + HIDDEN * 4 + HIDDEN * 2                         # h f32 + h bf16
                  + OUT_PAD * 4)                                    # fc2 f32 result
        + (4 << 20))                                                # headroom

    out_pad = pl.pallas_call(
        mlp_kernel,
        out_shape=jax.ShapeDtypeStruct((n, OUT_PAD), jnp.bfloat16),
        grid=grid,
        in_specs=[
            pl.BlockSpec((tile, IN_FEATURES), lambda i: (i, 0)),      # x tile (f32)
            pl.BlockSpec((IN_FEATURES, HIDDEN), lambda i: (0, 0)),    # W1 (resident)
            pl.BlockSpec((1, HIDDEN), lambda i: (0, 0)),              # b1 (resident)
            pl.BlockSpec((HIDDEN, OUT_PAD), lambda i: (0, 0)),        # W2 (resident)
            pl.BlockSpec((1, OUT_PAD), lambda i: (0, 0)),             # b2 (resident)
        ],
        out_specs=pl.BlockSpec((tile, OUT_PAD), lambda i: (i, 0)),
        compiler_params=pltpu.CompilerParams(
            dimension_semantics=("parallel",),
            vmem_limit_bytes=vmem_bytes,
        ),
    )(x, w1_t, b1_2d, w2_pad, b2_pad)

    # Tiny (n, 10) slice + cast for interface parity with the f32 PyTorch
    # module; no batch padding to strip (Pallas masked the last block).
    return out_pad[:, :OUT_FEATURES].astype(jnp.float32)


def init_params(key):
    """Deterministic init mimicking nn.Linear's uniform(-1/sqrt(fan_in), ...)."""
    k1, k2, k3, k4 = jax.random.split(key, 4)
    bound1 = 1.0 / jnp.sqrt(IN_FEATURES)
    bound2 = 1.0 / jnp.sqrt(HIDDEN)
    w1 = jax.random.uniform(k1, (HIDDEN, IN_FEATURES), jnp.float32, -bound1, bound1)
    b1 = jax.random.uniform(k2, (HIDDEN,), jnp.float32, -bound1, bound1)
    w2 = jax.random.uniform(k3, (OUT_FEATURES, HIDDEN), jnp.float32, -bound2, bound2)
    b2 = jax.random.uniform(k4, (OUT_FEATURES,), jnp.float32, -bound2, bound2)
    return w1, b1, w2, b2


if __name__ == "__main__":
    key = jax.random.PRNGKey(0)
    k_x, k_p, k_x2 = jax.random.split(key, 3)

    w1, b1, w2, b2 = init_params(k_p)
    params = prepare_params(w1, b1, w2, b2)   # one-time prep, not per call

    # Small batch (latency path: single masked tile).
    batch = 8
    x = jax.random.normal(k_x, (batch, IN_FEATURES), jnp.float32)
    out = jax.block_until_ready(relax_model_forward(x, *params))
    ref = jnp.maximum(x @ w1.T + b1, 0.0) @ w2.T + b2
    assert out.shape == (batch, OUT_FEATURES), out.shape
    assert jnp.allclose(out, ref, atol=3e-2, rtol=3e-2), "mismatch (small batch)"

    # Non-tile-multiple batch: exercises the batch grid + masked last block.
    batch2 = 300
    x2 = jax.random.normal(k_x2, (batch2, IN_FEATURES), jnp.float32)
    out2 = jax.block_until_ready(relax_model_forward(x2, *params))
    ref2 = jnp.maximum(x2 @ w1.T + b1, 0.0) @ w2.T + b2
    assert out2.shape == (batch2, OUT_FEATURES), out2.shape
    assert jnp.allclose(out2, ref2, atol=3e-2, rtol=3e-2), "mismatch (grid batch)"

    print("KERNEL_OK")
</pallas_src>

<mosaic_0001>
module attributes {stable_mosaic.version = 11 : i64} {
  func.func @mlp_kernel(%arg0: i32, %arg1: memref<16x784xf32, #tpu.memory_space<vmem>>, %arg2: memref<784x256xbf16, #tpu.memory_space<vmem>>, %arg3: memref<1x256xf32, #tpu.memory_space<vmem>>, %arg4: memref<256x128xbf16, #tpu.memory_space<vmem>>, %arg5: memref<1x128xf32, #tpu.memory_space<vmem>>, %arg6: memref<16x128xbf16, #tpu.memory_space<vmem>>) attributes {dimension_semantics = [#tpu.dimension_semantics<parallel>], iteration_bounds = array<i64: 1>, scalar_prefetch = 0 : i64, scratch_operands = 0 : i64, tpu.core_type = #tpu.core_type<tc>, window_params = [{transform_indices = @transform_0, window_bounds = array<i64: 16, 784>}, {pipeline_mode = #tpu.pipeline_mode<synchronous>, transform_indices = @transform_1, window_bounds = array<i64: 784, 256>}, {pipeline_mode = #tpu.pipeline_mode<synchronous>, transform_indices = @transform_2, window_bounds = array<i64: 1, 256>}, {pipeline_mode = #tpu.pipeline_mode<synchronous>, transform_indices = @transform_3, window_bounds = array<i64: 256, 128>}, {pipeline_mode = #tpu.pipeline_mode<synchronous>, transform_indices = @transform_4, window_bounds = array<i64: 1, 128>}, {transform_indices = @transform_5, window_bounds = array<i64: 16, 128>}]} {
    %c0 = arith.constant 0 : index
    %c0_0 = arith.constant 0 : index
    %0 = vector.load %arg1[%c0, %c0_0] : memref<16x784xf32, #tpu.memory_space<vmem>>, vector<16x784xf32>
    %1 = arith.truncf %0 : vector<16x784xf32> to vector<16x784xbf16>
    %c0_1 = arith.constant 0 : index
    %c0_2 = arith.constant 0 : index
    %2 = vector.load %arg2[%c0_1, %c0_2] : memref<784x256xbf16, #tpu.memory_space<vmem>>, vector<784x256xbf16>
    %cst = arith.constant dense<0.000000e+00> : vector<16x256xf32>
    %3 = tpu.matmul %1, %2, %cst {dimension_numbers = #tpu.dot_dimension_numbers<[1], [0], [0], [1], [0, 0, 1, 1], [], []>} : vector<16x784xbf16>, vector<784x256xbf16>, vector<16x256xf32> -> vector<16x256xf32>
    %c0_3 = arith.constant 0 : index
    %c0_4 = arith.constant 0 : index
    %4 = vector.load %arg3[%c0_3, %c0_4] : memref<1x256xf32, #tpu.memory_space<vmem>>, vector<1x256xf32>
    %5 = vector.broadcast %4 : vector<1x256xf32> to vector<16x256xf32>
    %6 = arith.addf %3, %5 : vector<16x256xf32>
    %cst_5 = arith.constant 0.000000e+00 : f32
    %7 = vector.broadcast %cst_5 : f32 to vector<16x256xf32>
    %8 = arith.maximumf %6, %7 : vector<16x256xf32>
    %9 = arith.truncf %8 : vector<16x256xf32> to vector<16x256xbf16>
    %c0_6 = arith.constant 0 : index
    %c0_7 = arith.constant 0 : index
    %10 = vector.load %arg4[%c0_6, %c0_7] : memref<256x128xbf16, #tpu.memory_space<vmem>>, vector<256x128xbf16>
    %cst_8 = arith.constant dense<0.000000e+00> : vector<16x128xf32>
    %11 = tpu.matmul %9, %10, %cst_8 {dimension_numbers = #tpu.dot_dimension_numbers<[1], [0], [0], [1], [0, 0, 1, 1], [], []>} : vector<16x256xbf16>, vector<256x128xbf16>, vector<16x128xf32> -> vector<16x128xf32>
    %c0_9 = arith.constant 0 : index
    %c0_10 = arith.constant 0 : index
    %12 = vector.load %arg5[%c0_9, %c0_10] : memref<1x128xf32, #tpu.memory_space<vmem>>, vector<1x128xf32>
    %13 = vector.broadcast %12 : vector<1x128xf32> to vector<16x128xf32>
    %14 = arith.addf %11, %13 : vector<16x128xf32>
    %15 = arith.truncf %14 : vector<16x128xf32> to vector<16x128xbf16>
    %c0_11 = arith.constant 0 : index
    %c0_12 = arith.constant 0 : index
    %16 = vector.load %arg6[%c0_11, %c0_12] : memref<16x128xbf16, #tpu.memory_space<vmem>>, vector<16x128xbf16>
    tpu.vector_store %arg6[%c0_11, %c0_12], %15 {strides = array<i32>} : memref<16x128xbf16, #tpu.memory_space<vmem>>, vector<16x128xbf16>,
    return
  }
  func.func @transform_0(%arg0: i32) -> (i32, i32) {
    %c0_i32 = arith.constant 0 : i32
    %c0_i32_0 = arith.constant 0 : i32
    return %arg0, %c0_i32 : i32, i32
  }
  func.func @transform_1(%arg0: i32) -> (i32, i32) {
    %c0_i32 = arith.constant 0 : i32
    %c0_i32_0 = arith.constant 0 : i32
    %c0_i32_1 = arith.constant 0 : i32
    return %c0_i32, %c0_i32_0 : i32, i32
  }
  func.func @transform_2(%arg0: i32) -> (i32, i32) {
    %c0_i32 = arith.constant 0 : i32
    %c0_i32_0 = arith.constant 0 : i32
    %c0_i32_1 = arith.constant 0 : i32
    return %c0_i32, %c0_i32_0 : i32, i32
  }
  func.func @transform_3(%arg0: i32) -> (i32, i32) {
    %c0_i32 = arith.constant 0 : i32
    %c0_i32_0 = arith.constant 0 : i32
    %c0_i32_1 = arith.constant 0 : i32
    return %c0_i32, %c0_i32_0 : i32, i32
  }
  func.func @transform_4(%arg0: i32) -> (i32, i32) {
    %c0_i32 = arith.constant 0 : i32
    %c0_i32_0 = arith.constant 0 : i32
    %c0_i32_1 = arith.constant 0 : i32
    return %c0_i32, %c0_i32_0 : i32, i32
  }
  func.func @transform_5(%arg0: i32) -> (i32, i32) {
    %c0_i32 = arith.constant 0 : i32
    %c0_i32_0 = arith.constant 0 : i32
    return %arg0, %c0_i32 : i32, i32
  }
}

</mosaic_0001>

<llo_original>
// kernel: relax_model_forward.1
$region0: #{relax_model_forward.1}
  #allocation0 [shape = 'u32[]', space=smem, size = 0x4, offset = 0x4, fixed_abs, tag = 'smem constant byte address 0x4 - core index']
  #allocation1 [shape = 'u32[144,128]{1,0:T(1,128)}', space=vmem, size = 0x12000, scoped, tag = 'internal scratch']
  %s0 = inlined_call_operand.hbm [shape: f32[8,784], index: 0, kind: input, shape index: {}]
  %s1 = inlined_call_operand.hbm [shape: bf16[784,256], index: 1, kind: input, shape index: {}]
  %s2 = inlined_call_operand.vmem [shape: f32[1,256], index: 2, kind: input, shape index: {}]
  %s3 = inlined_call_operand.hbm [shape: bf16[256,128], index: 3, kind: input, shape index: {}]
  %s4 = inlined_call_operand.vmem [shape: f32[1,128], index: 4, kind: input, shape index: {}]
  %s5 = inlined_call_operand.vmem [shape: bf16[8,128], index: 5, kind: output, shape index: {}]
  %s6 = sld [smem:[#allocation0]]
  $region72: #{relax_model_forward.1} parent=0
    _
  %s8 = ssub.s32 1, %s6
  %s9 = scalar_select 0, %s8, %s6
  $region1: #{relax_model_forward.1} parent=0
    #allocation2 [shape = 'u8[57344]{0}', space=vmem, size = 0xe000, scoped, tag = 'input window, operand 0, single buffered']
    #allocation3 [shape = 's32[1]{0}', space=sflag, size = 0x4, scoped, tag = 'scoped memory for relax_model_forward.1']
    #allocation4 [shape = 'u8[401408]{0}', space=vmem, size = 0x62000, scoped, tag = 'input window, operand 1, single buffered']
    #allocation5 [shape = 's32[1]{0}', space=sflag, size = 0x4, scoped, tag = 'scoped memory for relax_model_forward.1']
    #allocation6 [shape = 'u8[65536]{0}', space=vmem, size = 0x10000, scoped, tag = 'input window, operand 3, single buffered']
    #allocation7 [shape = 'u8[4096]{0}', space=vmem, size = 0x1000, scoped, tag = 'output window, operand 0, single buffered']
    %10 = vsyncpa [#allocation3], 0
    %11 = vsyncpa [#allocation5], 0
    // Predicated region
    $region2: #{relax_model_forward.1} parent=1 // pred_check
      _
    $region3: #{relax_model_forward.1} parent=1 // pred_check_branch
      %13 = sbr.rel (0) target = $region5
    $region4: #{relax_model_forward.1} parent=1 // pred_region
      %s15 = ssub.s32 1792, 896
      %16 = vsyncadd [#allocation3], %s15
      %s17 = sshll.u32 [#allocation2], 4
      %s18 = int_to_ptr.vmem [resolvable:$true] %s17
      %23 = dma.hbm_to_vmem [thread:$0]  %s0, 896, %s18, [#allocation3], 896, 896, 56
    $region5: #{relax_model_forward.1} parent=1 // pred_fallthru
      _
    // Predicated region
    $region6: #{relax_model_forward.1} parent=1 // pred_check
      _
    $region7: #{relax_model_forward.1} parent=1 // pred_check_branch
      %25 = sbr.rel (0) target = $region9
    $region8: #{relax_model_forward.1} parent=1 // pred_region
      %s27 = ssub.s32 12544, 12544
      %28 = vsyncadd [#allocation5], %s27
      %s29 = sshll.u32 [#allocation4], 4
      %s30 = int_to_ptr.vmem [resolvable:$true] %s29
      %35 = dma.hbm_to_vmem [thread:$0]  %s1, 12544, %s30, [#allocation5], 128, 128, 8
    $region9: #{relax_model_forward.1} parent=1 // pred_fallthru
      _
    // Predicated region
    $region10: #{relax_model_forward.1} parent=1 // pred_check
      _
    $region11: #{relax_model_forward.1} parent=1 // pred_check_branch
      %37 = sbr.rel (0) target = $region13
    $region12: #{relax_model_forward.1} parent=1 // pred_region
      _
    $region13: #{relax_model_forward.1} parent=1 // pred_fallthru
      _
    // Predicated region
    $region14: #{relax_model_forward.1} parent=1 // pred_check
      _
    $region15: #{relax_model_forward.1} parent=1 // pred_check_branch
      %39 = sbr.rel (0) target = $region17
    $region16: #{relax_model_forward.1} parent=1 // pred_region
      %s41 = ssub.s32 2048, 2048
      %42 = vsyncadd [#allocation5], %s41
      %s43 = sshll.u32 [#allocation6], 4
      %s44 = int_to_ptr.vmem [resolvable:$true] %s43
      %49 = dma.hbm_to_vmem [thread:$0]  %s3, 2048, %s44, [#allocation5], 64, 64, 4
    $region17: #{relax_model_forward.1} parent=1 // pred_fallthru
      _
    // Predicated region
    $region18: #{relax_model_forward.1} parent=1 // pred_check
      _
    $region19: #{relax_model_forward.1} parent=1 // pred_check_branch
      %51 = sbr.rel (0) target = $region21
    $region20: #{relax_model_forward.1} parent=1 // pred_region
      _
    $region21: #{relax_model_forward.1} parent=1 // pred_fallthru
      _
    // Predicated region
    $region22: #{relax_model_forward.1} parent=1 // pred_check
      _
    $region23: #{relax_model_forward.1} parent=1 // pred_check_branch
      %53 = sbr.rel (0) target = $region25
    $region24: #{relax_model_forward.1} parent=1 // pred_region
      %54 = dma.done [#allocation3], 1792
    $region25: #{relax_model_forward.1} parent=1 // pred_fallthru
      _
    // Predicated region
    $region26: #{relax_model_forward.1} parent=1 // pred_check
      _
    $region27: #{relax_model_forward.1} parent=1 // pred_check_branch
      %56 = sbr.rel (0) target = $region29
    $region28: #{relax_model_forward.1} parent=1 // pred_region
      %57 = dma.done [#allocation5], 12544
    $region29: #{relax_model_forward.1} parent=1 // pred_fallthru
      _
    // Predicated region
    $region30: #{relax_model_forward.1} parent=1 // pred_check
      _
    $region31: #{relax_model_forward.1} parent=1 // pred_check_branch
      %59 = sbr.rel (0) target = $region33
    $region32: #{relax_model_forward.1} parent=1 // pred_region
      %60 = dma.done [#allocation5], 2048
    $region33: #{relax_model_forward.1} parent=1 // pred_fallthru
      _
    %v62 = vld [vmem:[#allocation2] sm:$0xff]
    %v63 = vld [vmem:[#allocation2 + $0x8] sm:$0xff]
    %v64 = vld [vmem:[#allocation2 + $0x10] sm:$0xff]
    %v65 = vld [vmem:[#allocation2 + $0x18] sm:$0xff]
    %v66 = vld [vmem:[#allocation2 + $0x20] sm:$0xff]
    %v67 = vld [vmem:[#allocation2 + $0x28] sm:$0xff]
    %v68 = vld [vmem:[#allocation2 + $0x30] sm:$0xff]
    %v69 = vld [vmem:[#allocation2 + $0x38] sm:$0xff]
    %v70 = vld [vmem:[#allocation2 + $0x40] sm:$0xff]
    %v71 = vld [vmem:[#allocation2 + $0x48] sm:$0xff]
    %v72 = vld [vmem:[#allocation2 + $0x50] sm:$0xff]
    %v73 = vld [vmem:[#allocation2 + $0x58] sm:$0xff]
    %v74 = vld [vmem:[#allocation2 + $0x60] sm:$0xff]
    %v75 = vld [vmem:[#allocation2 + $0x68] sm:$0xff]
    %v76 = vpack.c.bf16 %v69, %v62
    %v77 = vpack.c.bf16 %v70, %v63
    %v78 = vpack.c.bf16 %v71, %v64
    %v79 = vpack.c.bf16 %v72, %v65
    %v80 = vpack.c.bf16 %v73, %v66
    %v81 = vpack.c.bf16 %v74, %v67
    %v82 = vpack.c.bf16 %v75, %v68
    %v83 = vld [vmem:[#allocation4] sm:$0xff]
    %v84 = vld [vmem:[#allocation4 + $0x8] sm:$0xff]
    %v85 = vld [vmem:[#allocation4 + $0x10] sm:$0xff]
    %v86 = vld [vmem:[#allocation4 + $0x18] sm:$0xff]
    %v87 = vld [vmem:[#allocation4 + $0x20] sm:$0xff]
    %v88 = vld [vmem:[#allocation4 + $0x28] sm:$0xff]
    %v89 = vld [vmem:[#allocation4 + $0x30] sm:$0xff]
    %v90 = vld [vmem:[#allocation4 + $0x38] sm:$0xff]
    %v91 = vld [vmem:[#allocation4 + $0x40] sm:$0xff]
    %v92 = vld [vmem:[#allocation4 + $0x48] sm:$0xff]
    %v93 = vld [vmem:[#allocation4 + $0x50] sm:$0xff]
    %v94 = vld [vmem:[#allocation4 + $0x58] sm:$0xff]
    %v95 = vld [vmem:[#allocation4 + $0x60] sm:$0xff]
    %v96 = vld [vmem:[#allocation4 + $0x68] sm:$0xff]
    %v97 = vld [vmem:[#allocation4 + $0x70] sm:$0xff]
    %v98 = vld [vmem:[#allocation4 + $0x78] sm:$0xff]
    %v99 = vld [vmem:[#allocation4 + $0x80] sm:$0xff]
    %v100 = vld [vmem:[#allocation4 + $0x88] sm:$0xff]
    %v101 = vld [vmem:[#allocation4 + $0x90] sm:$0xff]
    %v102 = vld [vmem:[#allocation4 + $0x98] sm:$0xff]
    %v103 = vld [vmem:[#allocation4 + $0xa0] sm:$0xff]
    %v104 = vld [vmem:[#allocation4 + $0xa8] sm:$0xff]
    %v105 = vld [vmem:[#allocation4 + $0xb0] sm:$0xff]
    %v106 = vld [vmem:[#allocation4 + $0xb8] sm:$0xff]
    %v107 = vld [vmem:[#allocation4 + $0xc0] sm:$0xff]
    %v108 = vld [vmem:[#allocation4 + $0xc8] sm:$0xff]
    %v109 = vld [vmem:[#allocation4 + $0xd0] sm:$0xff]
    %v110 = vld [vmem:[#allocation4 + $0xd8] sm:$0xff]
    %v111 = vld [vmem:[#allocation4 + $0xe0] sm:$0xff]
    %v112 = vld [vmem:[#allocation4 + $0xe8] sm:$0xff]
    %v113 = vld [vmem:[#allocation4 + $0xf0] sm:$0xff]
    %v114 = vld [vmem:[#allocation4 + $0xf8] sm:$0xff]
    %v115 = vld [vmem:[#allocation4 + $0x100] sm:$0xff]
    %v116 = vld [vmem:[#allocation4 + $0x108] sm:$0xff]
    %v117 = vld [vmem:[#allocation4 + $0x110] sm:$0xff]
    %v118 = vld [vmem:[#allocation4 + $0x118] sm:$0xff]
    %v119 = vld [vmem:[#allocation4 + $0x120] sm:$0xff]
    %v120 = vld [vmem:[#allocation4 + $0x128] sm:$0xff]
    %v121 = vld [vmem:[#allocation4 + $0x130] sm:$0xff]
    %v122 = vld [vmem:[#allocation4 + $0x138] sm:$0xff]
    %v123 = vld [vmem:[#allocation4 + $0x140] sm:$0xff]
    %v124 = vld [vmem:[#allocation4 + $0x148] sm:$0xff]
    %v125 = vld [vmem:[#allocation4 + $0x150] sm:$0xff]
    %v126 = vld [vmem:[#allocation4 + $0x158] sm:$0xff]
    %v127 = vld [vmem:[#allocation4 + $0x160] sm:$0xff]
    %v128 = vld [vmem:[#allocation4 + $0x168] sm:$0xff]
    %v129 = vld [vmem:[#allocation4 + $0x170] sm:$0xff]
    %v130 = vld [vmem:[#allocation4 + $0x178] sm:$0xff]
    %v131 = vld [vmem:[#allocation4 + $0x180] sm:$0xff]
    %v132 = vld [vmem:[#allocation4 + $0x188] sm:$0xff]
    %v133 = vld [vmem:[#allocation4 + $0x190] sm:$0xff]
    %v134 = vld [vmem:[#allocation4 + $0x198] sm:$0xff]
    %v135 = vld [vmem:[#allocation4 + $0x1a0] sm:$0xff]
    %v136 = vld [vmem:[#allocation4 + $0x1a8] sm:$0xff]
    %v137 = vld [vmem:[#allocation4 + $0x1b0] sm:$0xff]
    %v138 = vld [vmem:[#allocation4 + $0x1b8] sm:$0xff]
    %v139 = vld [vmem:[#allocation4 + $0x1c0] sm:$0xff]
    %v140 = vld [vmem:[#allocation4 + $0x1c8] sm:$0xff]
    %v141 = vld [vmem:[#allocation4 + $0x1d0] sm:$0xff]
    %v142 = vld [vmem:[#allocation4 + $0x1d8] sm:$0xff]
    %v143 = vld [vmem:[#allocation4 + $0x1e0] sm:$0xff]
    %v144 = vld [vmem:[#allocation4 + $0x1e8] sm:$0xff]
    %v145 = vld [vmem:[#allocation4 + $0x1f0] sm:$0xff]
    %v146 = vld [vmem:[#allocation4 + $0x1f8] sm:$0xff]
    %v147 = vld [vmem:[#allocation4 + $0x200] sm:$0xff]
    %v148 = vld [vmem:[#allocation4 + $0x208] sm:$0xff]
    %v149 = vld [vmem:[#allocation4 + $0x210] sm:$0xff]
    %v150 = vld [vmem:[#allocation4 + $0x218] sm:$0xff]
    %v151 = vld [vmem:[#allocation4 + $0x220] sm:$0xff]
    %v152 = vld [vmem:[#allocation4 + $0x228] sm:$0xff]
    %v153 = vld [vmem:[#allocation4 + $0x230] sm:$0xff]
    %v154 = vld [vmem:[#allocation4 + $0x238] sm:$0xff]
    %v155 = vld [vmem:[#allocation4 + $0x240] sm:$0xff]
    %v156 = vld [vmem:[#allocation4 + $0x248] sm:$0xff]
    %v157 = vld [vmem:[#allocation4 + $0x250] sm:$0xff]
    %v158 = vld [vmem:[#allocation4 + $0x258] sm:$0xff]
    %v159 = vld [vmem:[#allocation4 + $0x260] sm:$0xff]
    %v160 = vld [vmem:[#allocation4 + $0x268] sm:$0xff]
    %v161 = vld [vmem:[#allocation4 + $0x270] sm:$0xff]
    %v162 = vld [vmem:[#allocation4 + $0x278] sm:$0xff]
    %v163 = vld [vmem:[#allocation4 + $0x280] sm:$0xff]
    %v164 = vld [vmem:[#allocation4 + $0x288] sm:$0xff]
    %v165 = vld [vmem:[#allocation4 + $0x290] sm:$0xff]
    %v166 = vld [vmem:[#allocation4 + $0x298] sm:$0xff]
    %v167 = vld [vmem:[#allocation4 + $0x2a0] sm:$0xff]
    %v168 = vld [vmem:[#allocation4 + $0x2a8] sm:$0xff]
    %v169 = vld [vmem:[#allocation4 + $0x2b0] sm:$0xff]
    %v170 = vld [vmem:[#allocation4 + $0x2b8] sm:$0xff]
    %v171 = vld [vmem:[#allocation4 + $0x2c0] sm:$0xff]
    %v172 = vld [vmem:[#allocation4 + $0x2c8] sm:$0xff]
    %v173 = vld [vmem:[#allocation4 + $0x2d0] sm:$0xff]
    %v174 = vld [vmem:[#allocation4 + $0x2d8] sm:$0xff]
    %v175 = vld [vmem:[#allocation4 + $0x2e0] sm:$0xff]
    %v176 = vld [vmem:[#allocation4 + $0x2e8] sm:$0xff]
    %v177 = vld [vmem:[#allocation4 + $0x2f0] sm:$0xff]
    %v178 = vld [vmem:[#allocation4 + $0x2f8] sm:$0xff]
    %v179 = vld [vmem:[#allocation4 + $0x300] sm:$0xff]
    %v180 = vld [vmem:[#allocation4 + $0x308] sm:$0xff]
    %v181 = vld [vmem:[%s2] sm:$0x3]
    %v183 = vlaneseq
    %v184 = vshrl.u32 %v183, 7
    %v185 = vsub.s32 0, %v184
    %v186 = vrot.slane %v181, %v185
    %v187 = vlaneseq
    %v188 = vshrl.u32 %v187, 7
    %v189 = vsub.s32 1, %v188
    %v190 = vrot.slane %v181, %v189
    %v291 = vunpack.c.l.b16 %v83
    %v292 = vunpack.c.h.b16 %v83
    %v293 = vunpack.c.l.b16 %v84
    %v294 = vunpack.c.h.b16 %v84
    %v295 = vunpack.c.l.b16 %v85
    %v296 = vunpack.c.h.b16 %v85
    %v297 = vunpack.c.l.b16 %v86
    %v298 = vunpack.c.h.b16 %v86
    %v299 = vunpack.c.l.b16 %v87
    %v300 = vunpack.c.h.b16 %v87
    %v301 = vunpack.c.l.b16 %v88
    %v302 = vunpack.c.h.b16 %v88
    %v303 = vunpack.c.l.b16 %v89
    %v304 = vunpack.c.h.b16 %v89
    %v305 = vunpack.c.l.b16 %v90
    %v306 = vunpack.c.h.b16 %v90
    %v307 = vunpack.c.l.b16 %v91
    %v308 = vunpack.c.h.b16 %v91
    %v309 = vunpack.c.l.b16 %v92
    %v310 = vunpack.c.h.b16 %v92
    %v311 = vunpack.c.l.b16 %v93
    %v312 = vunpack.c.h.b16 %v93
    %v313 = vunpack.c.l.b16 %v94
    %v314 = vunpack.c.h.b16 %v94
    %v315 = vunpack.c.l.b16 %v95
    %v316 = vunpack.c.h.b16 %v95
    %v317 = vunpack.c.l.b16 %v96
    %v318 = vunpack.c.h.b16 %v96
    %v319 = vunpack.c.l.b16 %v97
    %v320 = vunpack.c.h.b16 %v97
    %v321 = vunpack.c.l.b16 %v98
    %v322 = vunpack.c.h.b16 %v98
    %v323 = vunpack.c.l.b16 %v99
    %v324 = vunpack.c.h.b16 %v99
    %v325 = vunpack.c.l.b16 %v100
    %v326 = vunpack.c.h.b16 %v100
    %v327 = vunpack.c.l.b16 %v101
    %v328 = vunpack.c.h.b16 %v101
    %v329 = vunpack.c.l.b16 %v102
    %v330 = vunpack.c.h.b16 %v102
    %v331 = vunpack.c.l.b16 %v103
    %v332 = vunpack.c.h.b16 %v103
    %v333 = vunpack.c.l.b16 %v104
    %v334 = vunpack.c.h.b16 %v104
    %v335 = vunpack.c.l.b16 %v105
    %v336 = vunpack.c.h.b16 %v105
    %v337 = vunpack.c.l.b16 %v106
    %v338 = vunpack.c.h.b16 %v106
    %v339 = vunpack.c.l.b16 %v107
    %v340 = vunpack.c.h.b16 %v107
    %v341 = vunpack.c.l.b16 %v108
    %v342 = vunpack.c.h.b16 %v108
    %v343 = vunpack.c.l.b16 %v109
    %v344 = vunpack.c.h.b16 %v109
    %v345 = vunpack.c.l.b16 %v110
    %v346 = vunpack.c.h.b16 %v110
    %v347 = vunpack.c.l.b16 %v111
    %v348 = vunpack.c.h.b16 %v111
    %v349 = vunpack.c.l.b16 %v112
    %v350 = vunpack.c.h.b16 %v112
    %v351 = vunpack.c.l.b16 %v113
    %v352 = vunpack.c.h.b16 %v113
    %v353 = vunpack.c.l.b16 %v114
    %v354 = vunpack.c.h.b16 %v114
    %v355 = vunpack.c.l.b16 %v115
    %v356 = vunpack.c.h.b16 %v115
    %v357 = vunpack.c.l.b16 %v116
    %v358 = vunpack.c.h.b16 %v116
    %v359 = vunpack.c.l.b16 %v117
    %v360 = vunpack.c.h.b16 %v117
    %v361 = vunpack.c.l.b16 %v118
    %v362 = vunpack.c.h.b16 %v118
    %v363 = vunpack.c.l.b16 %v119
    %v364 = vunpack.c.h.b16 %v119
    %v365 = vunpack.c.l.b16 %v120
    %v366 = vunpack.c.h.b16 %v120
    %v367 = vunpack.c.l.b16 %v121
    %v368 = vunpack.c.h.b16 %v121
    %v369 = vunpack.c.l.b16 %v122
    %v370 = vunpack.c.h.b16 %v122
    %v371 = vunpack.c.l.b16 %v123
    %v372 = vunpack.c.h.b16 %v123
    %v373 = vunpack.c.l.b16 %v124
    %v374 = vunpack.c.h.b16 %v124
    %v375 = vunpack.c.l.b16 %v125
    %v376 = vunpack.c.h.b16 %v125
    %v377 = vunpack.c.l.b16 %v126
    %v378 = vunpack.c.h.b16 %v126
    %v379 = vunpack.c.l.b16 %v127
    %v380 = vunpack.c.h.b16 %v127
    %v381 = vunpack.c.l.b16 %v128
    %v382 = vunpack.c.h.b16 %v128
    %v383 = vunpack.c.l.b16 %v129
    %v384 = vunpack.c.h.b16 %v129
    %v385 = vunpack.c.l.b16 %v130
    %v386 = vunpack.c.h.b16 %v130
    %v387 = vunpack.c.l.b16 %v131
    %v388 = vunpack.c.h.b16 %v131
    %v389 = vunpack.c.l.b16 %v132
    %v390 = vunpack.c.h.b16 %v132
    %v391 = vunpack.c.l.b16 %v133
    %v392 = vunpack.c.h.b16 %v133
    %v393 = vunpack.c.l.b16 %v134
    %v394 = vunpack.c.h.b16 %v134
    %v395 = vunpack.c.l.b16 %v135
    %v396 = vunpack.c.h.b16 %v135
    %v397 = vunpack.c.l.b16 %v136
    %v398 = vunpack.c.h.b16 %v136
    %v399 = vunpack.c.l.b16 %v137
    %v400 = vunpack.c.h.b16 %v137
    %v401 = vunpack.c.l.b16 %v138
    %v402 = vunpack.c.h.b16 %v138
    %v403 = vunpack.c.l.b16 %v139
    %v404 = vunpack.c.h.b16 %v139
    %v405 = vunpack.c.l.b16 %v140
    %v406 = vunpack.c.h.b16 %v140
    %v407 = vunpack.c.l.b16 %v141
    %v408 = vunpack.c.h.b16 %v141
    %v409 = vunpack.c.l.b16 %v142
    %v410 = vunpack.c.h.b16 %v142
    %v411 = vunpack.c.l.b16 %v143
    %v412 = vunpack.c.h.b16 %v143
    %v413 = vunpack.c.l.b16 %v144
    %v414 = vunpack.c.h.b16 %v144
    %v415 = vunpack.c.l.b16 %v145
    %v416 = vunpack.c.h.b16 %v145
    %v417 = vunpack.c.l.b16 %v146
    %v418 = vunpack.c.h.b16 %v146
    %v419 = vunpack.c.l.b16 %v147
    %v420 = vunpack.c.h.b16 %v147
    %v421 = vunpack.c.l.b16 %v148
    %v422 = vunpack.c.h.b16 %v148
    %v423 = vunpack.c.l.b16 %v149
    %v424 = vunpack.c.h.b16 %v149
    %v425 = vunpack.c.l.b16 %v150
    %v426 = vunpack.c.h.b16 %v150
    %v427 = vunpack.c.l.b16 %v151
    %v428 = vunpack.c.h.b16 %v151
    %v429 = vunpack.c.l.b16 %v152
    %v430 = vunpack.c.h.b16 %v152
    %v431 = vunpack.c.l.b16 %v153
    %v432 = vunpack.c.h.b16 %v153
    %v433 = vunpack.c.l.b16 %v154
    %v434 = vunpack.c.h.b16 %v154
    %v435 = vunpack.c.l.b16 %v155
    %v436 = vunpack.c.h.b16 %v155
    %v437 = vunpack.c.l.b16 %v156
    %v438 = vunpack.c.h.b16 %v156
    %v439 = vunpack.c.l.b16 %v157
    %v440 = vunpack.c.h.b16 %v157
    %v441 = vunpack.c.l.b16 %v158
    %v442 = vunpack.c.h.b16 %v158
    %v443 = vunpack.c.l.b16 %v159
    %v444 = vunpack.c.h.b16 %v159
    %v445 = vunpack.c.l.b16 %v160
    %v446 = vunpack.c.h.b16 %v160
    %v447 = vunpack.c.l.b16 %v161
    %v448 = vunpack.c.h.b16 %v161
    %v449 = vunpack.c.l.b16 %v162
    %v450 = vunpack.c.h.b16 %v162
    %v451 = vunpack.c.l.b16 %v163
    %v452 = vunpack.c.h.b16 %v163
    %v453 = vunpack.c.l.b16 %v164
    %v454 = vunpack.c.h.b16 %v164
    %v455 = vunpack.c.l.b16 %v165
    %v456 = vunpack.c.h.b16 %v165
    %v457 = vunpack.c.l.b16 %v166
    %v458 = vunpack.c.h.b16 %v166
    %v459 = vunpack.c.l.b16 %v167
    %v460 = vunpack.c.h.b16 %v167
    %v461 = vunpack.c.l.b16 %v168
    %v462 = vunpack.c.h.b16 %v168
    %v463 = vunpack.c.l.b16 %v169
    %v464 = vunpack.c.h.b16 %v169
    %v465 = vunpack.c.l.b16 %v170
    %v466 = vunpack.c.h.b16 %v170
    %v467 = vunpack.c.l.b16 %v171
    %v468 = vunpack.c.h.b16 %v171
    %v469 = vunpack.c.l.b16 %v172
    %v470 = vunpack.c.h.b16 %v172
    %v471 = vunpack.c.l.b16 %v173
    %v472 = vunpack.c.h.b16 %v173
    %v473 = vunpack.c.l.b16 %v174
    %v474 = vunpack.c.h.b16 %v174
    %v475 = vunpack.c.l.b16 %v175
    %v476 = vunpack.c.h.b16 %v175
    %v477 = vunpack.c.l.b16 %v176
    %v478 = vunpack.c.h.b16 %v176
    %v479 = vunpack.c.l.b16 %v177
    %v480 = vunpack.c.h.b16 %v177
    %v481 = vunpack.c.l.b16 %v178
    %v482 = vunpack.c.h.b16 %v178
    %v483 = vunpack.c.l.b16 %v179
    %v484 = vunpack.c.h.b16 %v179
    %v485 = vunpack.c.l.b16 %v180
    %v486 = vunpack.c.h.b16 %v180
    %v487 = vpack.c.b16 %v293, %v291
    %v488 = vpack.c.b16 %v294, %v292
    %v489 = vpack.c.b16 %v297, %v295
    %v490 = vpack.c.b16 %v298, %v296
    %v491 = vpack.c.b16 %v301, %v299
    %v492 = vpack.c.b16 %v302, %v300
    %v493 = vpack.c.b16 %v305, %v303
    %v494 = vpack.c.b16 %v306, %v304
    %v495 = vpack.c.b16 %v309, %v307
    %v496 = vpack.c.b16 %v310, %v308
    %v497 = vpack.c.b16 %v313, %v311
    %v498 = vpack.c.b16 %v314, %v312
    %v499 = vpack.c.b16 %v317, %v315
    %v500 = vpack.c.b16 %v318, %v316
    %v501 = vpack.c.b16 %v321, %v319
    %v502 = vpack.c.b16 %v322, %v320
    %v503 = vpack.c.b16 %v325, %v323
    %v504 = vpack.c.b16 %v326, %v324
    %v505 = vpack.c.b16 %v329, %v327
    %v506 = vpack.c.b16 %v330, %v328
    %v507 = vpack.c.b16 %v333, %v331
    %v508 = vpack.c.b16 %v334, %v332
    %v509 = vpack.c.b16 %v337, %v335
    %v510 = vpack.c.b16 %v338, %v336
    %v511 = vpack.c.b16 %v341, %v339
    %v512 = vpack.c.b16 %v342, %v340
    %v513 = vpack.c.b16 %v345, %v343
    %v514 = vpack.c.b16 %v346, %v344
    %v515 = vpack.c.b16 %v349, %v347
    %v516 = vpack.c.b16 %v350, %v348
    %v517 = vpack.c.b16 %v353, %v351
    %v518 = vpack.c.b16 %v354, %v352
    %v519 = vpack.c.b16 %v357, %v355
    %v520 = vpack.c.b16 %v358, %v356
    %v521 = vpack.c.b16 %v361, %v359
    %v522 = vpack.c.b16 %v362, %v360
    %v523 = vpack.c.b16 %v365, %v363
    %v524 = vpack.c.b16 %v366, %v364
    %v525 = vpack.c.b16 %v369, %v367
    %v526 = vpack.c.b16 %v370, %v368
    %v527 = vpack.c.b16 %v373, %v371
    %v528 = vpack.c.b16 %v374, %v372
    %v529 = vpack.c.b16 %v377, %v375
    %v530 = vpack.c.b16 %v378, %v376
    %v531 = vpack.c.b16 %v381, %v379
    %v532 = vpack.c.b16 %v382, %v380
    %v533 = vpack.c.b16 %v385, %v383
    %v534 = vpack.c.b16 %v386, %v384
    %v535 = vpack.c.b16 %v389, %v387
    %v536 = vpack.c.b16 %v390, %v388
    %v537 = vpack.c.b16 %v393, %v391
    %v538 = vpack.c.b16 %v394, %v392
    %v539 = vpack.c.b16 %v397, %v395
    %v540 = vpack.c.b16 %v398, %v396
    %v541 = vpack.c.b16 %v401, %v399
    %v542 = vpack.c.b16 %v402, %v400
    %v543 = vpack.c.b16 %v405, %v403
    %v544 = vpack.c.b16 %v406, %v404
    %v545 = vpack.c.b16 %v409, %v407
    %v546 = vpack.c.b16 %v410, %v408
    %v547 = vpack.c.b16 %v413, %v411
    %v548 = vpack.c.b16 %v414, %v412
    %v549 = vpack.c.b16 %v417, %v415
    %v550 = vpack.c.b16 %v418, %v416
    %v551 = vpack.c.b16 %v421, %v419
    %v552 = vpack.c.b16 %v422, %v420
    %v553 = vpack.c.b16 %v425, %v423
    %v554 = vpack.c.b16 %v426, %v424
    %v555 = vpack.c.b16 %v429, %v427
    %v556 = vpack.c.b16 %v430, %v428
    %v557 = vpack.c.b16 %v433, %v431
    %v558 = vpack.c.b16 %v434, %v432
    %v559 = vpack.c.b16 %v437, %v435
    %v560 = vpack.c.b16 %v438, %v436
    %v561 = vpack.c.b16 %v441, %v439
    %v562 = vpack.c.b16 %v442, %v440
    %v563 = vpack.c.b16 %v445, %v443
    %v564 = vpack.c.b16 %v446, %v444
    %v565 = vpack.c.b16 %v449, %v447
    %v566 = vpack.c.b16 %v450, %v448
    %v567 = vpack.c.b16 %v453, %v451
    %v568 = vpack.c.b16 %v454, %v452
    %v569 = vpack.c.b16 %v457, %v455
    %v570 = vpack.c.b16 %v458, %v456
    %v571 = vpack.c.b16 %v461, %v459
    %v572 = vpack.c.b16 %v462, %v460
    %v573 = vpack.c.b16 %v465, %v463
    %v574 = vpack.c.b16 %v466, %v464
    %v575 = vpack.c.b16 %v469, %v467
    %v576 = vpack.c.b16 %v470, %v468
    %v577 = vpack.c.b16 %v473, %v471
    %v578 = vpack.c.b16 %v474, %v472
    %v579 = vpack.c.b16 %v477, %v475
    %v580 = vpack.c.b16 %v478, %v476
    %v581 = vpack.c.b16 %v481, %v479
    %v582 = vpack.c.b16 %v482, %v480
    %v583 = vpack.c.b16 %v485, %v483
    %v584 = vpack.c.b16 %v486, %v484
    %vm683 = vcmask 130048
    %v685 = vsel %vm683, %v82, 0
    %687 = vmatprep.subr.bf16.mxu0 %v488
    %688 = vmatpush1.bf16.msra.mxu0 %v487
    %689 = vmatprep.subr.bf16.mxu0 %v490
    %690 = vmatpush1.bf16.msra.mxu0 %v489
    %691 = vmatprep.subr.bf16.mxu0 %v492
    %692 = vmatpush1.bf16.msra.mxu0 %v491
    %693 = vmatprep.subr.bf16.mxu0 %v494
    %694 = vmatpush1.bf16.msra.mxu0 %v493
    %695 = vmatprep.subr.bf16.mxu0 %v496
    %696 = vmatpush1.bf16.msra.mxu0 %v495
    %697 = vmatprep.subr.bf16.mxu0 %v498
    %698 = vmatpush1.bf16.msra.mxu0 %v497
    %699 = vmatprep.subr.bf16.mxu0 %v500
    %700 = vmatpush1.bf16.msra.mxu0 %v499
    %701 = vmatprep.subr.bf16.mxu0 %v502
    %702 = vmatpush1.bf16.msra.mxu0 %v501
    %703 = vmatprep.subr.bf16.mxu0 %v504
    %704 = vmatpush1.bf16.msra.mxu0 %v503
    %705 = vmatprep.subr.bf16.mxu0 %v506
    %706 = vmatpush1.bf16.msra.mxu0 %v505
    %707 = vmatprep.subr.bf16.mxu0 %v508
    %708 = vmatpush1.bf16.msra.mxu0 %v507
    %709 = vmatprep.subr.bf16.mxu0 %v510
    %710 = vmatpush1.bf16.msra.mxu0 %v509
    %711 = vmatprep.subr.bf16.mxu0 %v512
    %712 = vmatpush1.bf16.msra.mxu0 %v511
    %713 = vmatprep.subr.bf16.mxu0 %v514
    %714 = vmatpush1.bf16.msra.mxu0 %v513
    %715 = vmatprep.subr.bf16.mxu0 %v516
    %716 = vmatpush1.bf16.msra.mxu0 %v515
    %717 = vmatprep.subr.bf16.mxu0 %v518
    %718 = vmatpush1.bf16.msra.mxu0 %v517
    %719 = vmatprep.mubr.bf16.mxu0 %v77
    %720 = vmatmul.mubr.bf16.gmra.mrb[0].mxu0 %v76
    %v721 = vpop.f32.mrb[0].mxu0
    %v722 = vadd.f32 %v186, %v721
    %v723 = vpop.f32.mrb[0].mxu0
    %v724 = vadd.f32 %v190, %v723
    %v725 = vpop.f32.mrb[0].mxu0
    %v726 = vadd.f32 %v186, %v725
    %v727 = vpop.f32.mrb[0].mxu0
    %v728 = vadd.f32 %v190, %v727
    %729 = vdwg.mxu0
    %730 = vmatprep.subr.bf16.mxu0 %v520
    %731 = vmatpush1.bf16.msra.mxu0 %v519
    %732 = vmatprep.subr.bf16.mxu0 %v522
    %733 = vmatpush1.bf16.msra.mxu0 %v521
    %734 = vmatprep.subr.bf16.mxu0 %v524
    %735 = vmatpush1.bf16.msra.mxu0 %v523
    %736 = vmatprep.subr.bf16.mxu0 %v526
    %737 = vmatpush1.bf16.msra.mxu0 %v525
    %738 = vmatprep.subr.bf16.mxu0 %v528
    %739 = vmatpush1.bf16.msra.mxu0 %v527
    %740 = vmatprep.subr.bf16.mxu0 %v530
    %741 = vmatpush1.bf16.msra.mxu0 %v529
    %742 = vmatprep.subr.bf16.mxu0 %v532
    %743 = vmatpush1.bf16.msra.mxu0 %v531
    %744 = vmatprep.subr.bf16.mxu0 %v534
    %745 = vmatpush1.bf16.msra.mxu0 %v533
    %746 = vmatprep.subr.bf16.mxu0 %v536
    %747 = vmatpush1.bf16.msra.mxu0 %v535
    %748 = vmatprep.subr.bf16.mxu0 %v538
    %749 = vmatpush1.bf16.msra.mxu0 %v537
    %750 = vmatprep.subr.bf16.mxu0 %v540
    %751 = vmatpush1.bf16.msra.mxu0 %v539
    %752 = vmatprep.subr.bf16.mxu0 %v542
    %753 = vmatpush1.bf16.msra.mxu0 %v541
    %754 = vmatprep.subr.bf16.mxu0 %v544
    %755 = vmatpush1.bf16.msra.mxu0 %v543
    %756 = vmatprep.subr.bf16.mxu0 %v546
    %757 = vmatpush1.bf16.msra.mxu0 %v545
    %758 = vmatprep.subr.bf16.mxu0 %v548
    %759 = vmatpush1.bf16.msra.mxu0 %v547
    %760 = vmatprep.subr.bf16.mxu0 %v550
    %761 = vmatpush1.bf16.msra.mxu0 %v549
    %762 = vmatprep.mubr.bf16.mxu0 %v79
    %763 = vmatmul.mubr.bf16.gmra.mrb[0].mxu0 %v78
    %v764 = vpop.f32.mrb[0].mxu0
    %v765 = vadd.f32 %v722, %v764
    %v766 = vpop.f32.mrb[0].mxu0
    %v767 = vadd.f32 %v724, %v766
    %v768 = vpop.f32.mrb[0].mxu0
    %v769 = vadd.f32 %v726, %v768
    %v770 = vpop.f32.mrb[0].mxu0
    %v771 = vadd.f32 %v728, %v770
    %772 = vdwg.mxu0
    %773 = vmatprep.subr.bf16.mxu0 %v552
    %774 = vmatpush1.bf16.msra.mxu0 %v551
    %775 = vmatprep.subr.bf16.mxu0 %v554
    %776 = vmatpush1.bf16.msra.mxu0 %v553
    %777 = vmatprep.subr.bf16.mxu0 %v556
    %778 = vmatpush1.bf16.msra.mxu0 %v555
    %779 = vmatprep.subr.bf16.mxu0 %v558
    %780 = vmatpush1.bf16.msra.mxu0 %v557
    %781 = vmatprep.subr.bf16.mxu0 %v560
    %782 = vmatpush1.bf16.msra.mxu0 %v559
    %783 = vmatprep.subr.bf16.mxu0 %v562
    %784 = vmatpush1.bf16.msra.mxu0 %v561
    %785 = vmatprep.subr.bf16.mxu0 %v564
    %786 = vmatpush1.bf16.msra.mxu0 %v563
    %787 = vmatprep.subr.bf16.mxu0 %v566
    %788 = vmatpush1.bf16.msra.mxu0 %v565
    %789 = vmatprep.subr.bf16.mxu0 %v568
    %790 = vmatpush1.bf16.msra.mxu0 %v567
    %791 = vmatprep.subr.bf16.mxu0 %v570
    %792 = vmatpush1.bf16.msra.mxu0 %v569
    %793 = vmatprep.subr.bf16.mxu0 %v572
    %794 = vmatpush1.bf16.msra.mxu0 %v571
    %795 = vmatprep.subr.bf16.mxu0 %v574
    %796 = vmatpush1.bf16.msra.mxu0 %v573
    %797 = vmatprep.subr.bf16.mxu0 %v576
    %798 = vmatpush1.bf16.msra.mxu0 %v575
    %799 = vmatprep.subr.bf16.mxu0 %v578
    %800 = vmatpush1.bf16.msra.mxu0 %v577
    %801 = vmatprep.subr.bf16.mxu0 %v580
    %802 = vmatpush1.bf16.msra.mxu0 %v579
    %803 = vmatprep.subr.bf16.mxu0 %v582
    %804 = vmatpush1.bf16.msra.mxu0 %v581
    %805 = vmatprep.mubr.bf16.mxu0 %v81
    %806 = vmatmul.mubr.bf16.gmra.mrb[0].mxu0 %v80
    %v807 = vpop.f32.mrb[0].mxu0
    %v808 = vadd.f32 %v765, %v807
    %v809 = vpop.f32.mrb[0].mxu0
    %v810 = vadd.f32 %v767, %v809
    %v811 = vpop.f32.mrb[0].mxu0
    %v812 = vadd.f32 %v769, %v811
    %v813 = vpop.f32.mrb[0].mxu0
    %v814 = vadd.f32 %v771, %v813
    %815 = vdwg.mxu0
    %816 = vmatprep.subr.bf16.mxu0 %v584
    %817 = vmatpush1.bf16.msra.mxu0 %v583
    %818 = vmatprep.subr.bf16.mxu0 0
    %819 = vmatpush1.bf16.msra.mxu0 0
    %820 = vmatprep.subr.bf16.mxu0 0
    %821 = vmatpush1.bf16.msra.mxu0 0
    %822 = vmatprep.subr.bf16.mxu0 0
    %823 = vmatpush1.bf16.msra.mxu0 0
    %824 = vmatprep.subr.bf16.mxu0 0
    %825 = vmatpush1.bf16.msra.mxu0 0
    %826 = vmatprep.subr.bf16.mxu0 0
    %827 = vmatpush1.bf16.msra.mxu0 0
    %828 = vmatprep.subr.bf16.mxu0 0
    %829 = vmatpush1.bf16.msra.mxu0 0
    %830 = vmatprep.subr.bf16.mxu0 0
    %831 = vmatpush1.bf16.msra.mxu0 0
    %832 = vmatprep.subr.bf16.mxu0 0
    %833 = vmatpush1.bf16.msra.mxu0 0
    %834 = vmatprep.subr.bf16.mxu0 0
    %835 = vmatpush1.bf16.msra.mxu0 0
    %836 = vmatprep.subr.bf16.mxu0 0
    %837 = vmatpush1.bf16.msra.mxu0 0
    %838 = vmatprep.subr.bf16.mxu0 0
    %839 = vmatpush1.bf16.msra.mxu0 0
    %840 = vmatprep.subr.bf16.mxu0 0
    %841 = vmatpush1.bf16.msra.mxu0 0
    %842 = vmatprep.subr.bf16.mxu0 0
    %843 = vmatpush1.bf16.msra.mxu0 0
    %844 = vmatprep.subr.bf16.mxu0 0
    %845 = vmatpush1.bf16.msra.mxu0 0
    %846 = vmatprep.subr.bf16.mxu0 0
    %847 = vmatpush1.bf16.msra.mxu0 0
    %848 = vmatprep.mubr.bf16.mxu0 0
    %849 = vmatmul.mubr.bf16.gmra.mrb[0].mxu0 %v685
    %v850 = vpop.f32.mrb[0].mxu0
    %v851 = vadd.f32 %v808, %v850
    %v852 = vpop.f32.mrb[0].mxu0
    %v853 = vadd.f32 %v810, %v852
    %v854 = vpop.f32.mrb[0].mxu0
    %v855 = vadd.f32 %v812, %v854
    %v856 = vpop.f32.mrb[0].mxu0
    %v857 = vadd.f32 %v814, %v856
    %858 = vdwg.mxu0
    %v859 = vmax.f32 %v851, 0.0
    %v860 = vmax.f32 %v853, 0.0
    %v861 = vmax.f32 %v855, 0.0
    %v862 = vmax.f32 %v857, 0.0
    %v863 = vpack.c.bf16 %v861, %v859
    %v864 = vpack.c.bf16 %v862, %v860
    %v865 = vld [vmem:[#allocation6] sm:$0xf]
    %v866 = vld [vmem:[#allocation6 + $0x4] sm:$0xf]
    %v867 = vld [vmem:[#allocation6 + $0x8] sm:$0xf]
    %v868 = vld [vmem:[#allocation6 + $0xc] sm:$0xf]
    %v869 = vld [vmem:[#allocation6 + $0x10] sm:$0xf]
    %v870 = vld [vmem:[#allocation6 + $0x14] sm:$0xf]
    %v871 = vld [vmem:[#allocation6 + $0x18] sm:$0xf]
    %v872 = vld [vmem:[#allocation6 + $0x1c] sm:$0xf]
    %v873 = vld [vmem:[#allocation6 + $0x20] sm:$0xf]
    %v874 = vld [vmem:[#allocation6 + $0x24] sm:$0xf]
    %v875 = vld [vmem:[#allocation6 + $0x28] sm:$0xf]
    %v876 = vld [vmem:[#allocation6 + $0x2c] sm:$0xf]
    %v877 = vld [vmem:[#allocation6 + $0x30] sm:$0xf]
    %v878 = vld [vmem:[#allocation6 + $0x34] sm:$0xf]
    %v879 = vld [vmem:[#allocation6 + $0x38] sm:$0xf]
    %v880 = vld [vmem:[#allocation6 + $0x3c] sm:$0xf]
    %v881 = vld [vmem:[#allocation6 + $0x40] sm:$0xf]
    %v882 = vld [vmem:[#allocation6 + $0x44] sm:$0xf]
    %v883 = vld [vmem:[#allocation6 + $0x48] sm:$0xf]
    %v884 = vld [vmem:[#allocation6 + $0x4c] sm:$0xf]
    %v885 = vld [vmem:[#allocation6 + $0x50] sm:$0xf]
    %v886 = vld [vmem:[#allocation6 + $0x54] sm:$0xf]
    %v887 = vld [vmem:[#allocation6 + $0x58] sm:$0xf]
    %v888 = vld [vmem:[#allocation6 + $0x5c] sm:$0xf]
    %v889 = vld [vmem:[#allocation6 + $0x60] sm:$0xf]
    %v890 = vld [vmem:[#allocation6 + $0x64] sm:$0xf]
    %v891 = vld [vmem:[#allocation6 + $0x68] sm:$0xf]
    %v892 = vld [vmem:[#allocation6 + $0x6c] sm:$0xf]
    %v893 = vld [vmem:[#allocation6 + $0x70] sm:$0xf]
    %v894 = vld [vmem:[#allocation6 + $0x74] sm:$0xf]
    %v895 = vld [vmem:[#allocation6 + $0x78] sm:$0xf]
    %v896 = vld [vmem:[#allocation6 + $0x7c] sm:$0xf]
    %v897 = vld [vmem:[%s4] sm:$0x1]
    %v899 = vlaneseq
    %v900 = vshrl.u32 %v899, 7
    %v901 = vsub.s32 0, %v900
    %v902 = vrot.slane %v897, %v901
    %v936 = vunpack.c.l.b16 %v865
    %v937 = vunpack.c.l.b16 %v866
    %v938 = vunpack.c.l.b16 %v867
    %v939 = vunpack.c.l.b16 %v868
    %v940 = vunpack.c.l.b16 %v869
    %v941 = vunpack.c.l.b16 %v870
    %v942 = vunpack.c.l.b16 %v871
    %v943 = vunpack.c.l.b16 %v872
    %v944 = vunpack.c.l.b16 %v873
    %v945 = vunpack.c.l.b16 %v874
    %v946 = vunpack.c.l.b16 %v875
    %v947 = vunpack.c.l.b16 %v876
    %v948 = vunpack.c.l.b16 %v877
    %v949 = vunpack.c.l.b16 %v878
    %v950 = vunpack.c.l.b16 %v879
    %v951 = vunpack.c.l.b16 %v880
    %v952 = vunpack.c.l.b16 %v881
    %v953 = vunpack.c.l.b16 %v882
    %v954 = vunpack.c.l.b16 %v883
    %v955 = vunpack.c.l.b16 %v884
    %v956 = vunpack.c.l.b16 %v885
    %v957 = vunpack.c.l.b16 %v886
    %v958 = vunpack.c.l.b16 %v887
    %v959 = vunpack.c.l.b16 %v888
    %v960 = vunpack.c.l.b16 %v889
    %v961 = vunpack.c.l.b16 %v890
    %v962 = vunpack.c.l.b16 %v891
    %v963 = vunpack.c.l.b16 %v892
    %v964 = vunpack.c.l.b16 %v893
    %v965 = vunpack.c.l.b16 %v894
    %v966 = vunpack.c.l.b16 %v895
    %v967 = vunpack.c.l.b16 %v896
    %v968 = vpack.c.b16 %v937, %v936
    %v969 = vpack.c.b16 %v939, %v938
    %v970 = vpack.c.b16 %v941, %v940
    %v971 = vpack.c.b16 %v943, %v942
    %v972 = vpack.c.b16 %v945, %v944
    %v973 = vpack.c.b16 %v947, %v946
    %v974 = vpack.c.b16 %v949, %v948
    %v975 = vpack.c.b16 %v951, %v950
    %v976 = vpack.c.b16 %v953, %v952
    %v977 = vpack.c.b16 %v955, %v954
    %v978 = vpack.c.b16 %v957, %v956
    %v979 = vpack.c.b16 %v959, %v958
    %v980 = vpack.c.b16 %v961, %v960
    %v981 = vpack.c.b16 %v963, %v962
    %v982 = vpack.c.b16 %v965, %v964
    %v983 = vpack.c.b16 %v967, %v966
    %1000 = vmatprep.subr.bf16.mxu0 0
    %1001 = vmatpush1.bf16.msra.mxu0 %v968
    %1002 = vmatprep.subr.bf16.mxu0 0
    %1003 = vmatpush1.bf16.msra.mxu0 %v969
    %1004 = vmatprep.subr.bf16.mxu0 0
    %1005 = vmatpush1.bf16.msra.mxu0 %v970
    %1006 = vmatprep.subr.bf16.mxu0 0
    %1007 = vmatpush1.bf16.msra.mxu0 %v971
    %1008 = vmatprep.subr.bf16.mxu0 0
    %1009 = vmatpush1.bf16.msra.mxu0 %v972
    %1010 = vmatprep.subr.bf16.mxu0 0
    %1011 = vmatpush1.bf16.msra.mxu0 %v973
    %1012 = vmatprep.subr.bf16.mxu0 0
    %1013 = vmatpush1.bf16.msra.mxu0 %v974
    %1014 = vmatprep.subr.bf16.mxu0 0
    %1015 = vmatpush1.bf16.msra.mxu0 %v975
    %1016 = vmatprep.subr.bf16.mxu0 0
    %1017 = vmatpush1.bf16.msra.mxu0 %v976
    %1018 = vmatprep.subr.bf16.mxu0 0
    %1019 = vmatpush1.bf16.msra.mxu0 %v977
    %1020 = vmatprep.subr.bf16.mxu0 0
    %1021 = vmatpush1.bf16.msra.mxu0 %v978
    %1022 = vmatprep.subr.bf16.mxu0 0
    %1023 = vmatpush1.bf16.msra.mxu0 %v979
    %1024 = vmatprep.subr.bf16.mxu0 0
    %1025 = vmatpush1.bf16.msra.mxu0 %v980
    %1026 = vmatprep.subr.bf16.mxu0 0
    %1027 = vmatpush1.bf16.msra.mxu0 %v981
    %1028 = vmatprep.subr.bf16.mxu0 0
    %1029 = vmatpush1.bf16.msra.mxu0 %v982
    %1030 = vmatprep.subr.bf16.mxu0 0
    %1031 = vmatpush1.bf16.msra.mxu0 %v983
    %1032 = vmatprep.mubr.bf16.mxu0 %v864
    %1033 = vmatmul.mubr.bf16.gmra.mrb[0].mxu0 %v863
    %v1034 = vpop.f32.mrb[0].mxu0
    %v1035 = vadd.f32 %v902, %v1034
    %v1036 = vpop.f32.mrb[0].mxu0
    %v1037 = vpop.f32.mrb[0].mxu0
    %v1038 = vadd.f32 %v902, %v1037
    %v1039 = vpop.f32.mrb[0].mxu0
    %1040 = vdwg.mxu0
    %v1041 = vpack.c.bf16 %v1038, %v1035
    %v1043 = vunpack.c.l.b16 %v1041
    %v1044 = vunpack.c.h.b16 %v1041
    %v1045 = vpack.c.b16 %v1043, %v1043
    %v1046 = vpack.c.b16 %v1044, %v1044
    %1049 = vst [vmem:[#allocation7] sm:$0xf] %v1045
    %1050 = vst [vmem:[#allocation7 + $0x4] sm:$0xf] %v1046
    // Predicated region
    $region34: #{relax_model_forward.1} parent=1 // pred_check
      _
    $region35: #{relax_model_forward.1} parent=1 // pred_check_branch
      %1052 = sbr.rel (0) target = $region37
    $region36: #{relax_model_forward.1} parent=1 // pred_region
      // Predicated region
      $region38: #{relax_model_forward.1} parent=36 // pred_check
        _
      $region39: #{relax_model_forward.1} parent=36 // pred_check_branch
        %1054 = sbr.rel (0) target = $region41
      $region40: #{relax_model_forward.1} parent=36 // pred_region
        // Predicated region
        $region42: #{relax_model_forward.1} parent=40 // pred_check
          _
        $region43: #{relax_model_forward.1} parent=40 // pred_check_branch
          %1056 = sbr.rel target = $region45
        $region44: #{relax_model_forward.1} parent=40 // pred_region
          // Predicated region
          $region57: #{relax_model_forward.1} parent=44 // pred_check
            _
          $region58: #{relax_model_forward.1} parent=44 // pred_check_branch
            %1071 = sbr.rel (0) target = $region60
          $region59: #{relax_model_forward.1} parent=44 // pred_region
            loop: start=0, step=1, limit=1
            $region61: #{relax_model_forward.1} parent=59 // loop_pre_header
              _
            $region62: #{relax_model_forward.1} parent=59 // loop_header
              %s1074 = sphi 0, %s1078
              %p1075 = scmp.ge.s32.totalorder %s1074, 1
              %s1079 = sphi [#allocation7], [#allocation7]
              %s1080 = sphi %s5, %s5
            $region63: #{relax_model_forward.1} parent=59 // loop_header_branch
              %1077 = sbr.rel (%p1075) target = $region67
            $region64: #{relax_model_forward.1} parent=59 // loop_body
              %v1081 = vld [vmem:[%s1079] sm:$0xf]
              %1082 = vst [vmem:[%s1080] sm:$0xf] %v1081
            $region65: #{relax_model_forward.1} parent=59 // loop_footer
              %s1078 = sadd.s32 1, %s1074
            $region66: #{relax_model_forward.1} parent=59 // loop_footer_branch
              %1073 = sbr.rel target = $region62
            $region67: #{relax_model_forward.1} parent=59 // loop_exit
              _
          $region60: #{relax_model_forward.1} parent=44 // pred_fallthru
            _
        $region45: #{relax_model_forward.1} parent=40 // pred_fallthru
          _
        // Predicated region
        $region46: #{relax_model_forward.1} parent=40 // pred_check
          _
        $region47: #{relax_model_forward.1} parent=40 // pred_check_branch
          %1058 = sbr.rel (0) target = $region49
        $region48: #{relax_model_forward.1} parent=40 // pred_region
          loop: start=0, step=1, limit=1
          $region50: #{relax_model_forward.1} parent=48 // loop_pre_header
            _
          $region51: #{relax_model_forward.1} parent=48 // loop_header
            %s1061 = sphi 0, %s1065
            %p1062 = scmp.ge.s32.totalorder %s1061, 1
            %s1066 = sphi [#allocation7], [#allocation7]
            %s1067 = sphi %s5, %s5
          $region52: #{relax_model_forward.1} parent=48 // loop_header_branch
            %1064 = sbr.rel (%p1062) target = $region56
          $region53: #{relax_model_forward.1} parent=48 // loop_body
            %v1068 = vld [vmem:[%s1066] sm:$0xf]
            %1069 = vst [vmem:[%s1067] sm:$0xf] %v1068
          $region54: #{relax_model_forward.1} parent=48 // loop_footer
            %s1065 = sadd.s32 1, %s1061
          $region55: #{relax_model_forward.1} parent=48 // loop_footer_branch
            %1060 = sbr.rel target = $region51
          $region56: #{relax_model_forward.1} parent=48 // loop_exit
            _
        $region49: #{relax_model_forward.1} parent=40 // pred_fallthru
          _
      $region41: #{relax_model_forward.1} parent=36 // pred_fallthru
        _
      %1083 = vnop
    $region37: #{relax_model_forward.1} parent=1 // pred_fallthru
      _
    // Predicated region
    $region68: #{relax_model_forward.1} parent=1 // pred_check
      _
    $region69: #{relax_model_forward.1} parent=1 // pred_check_branch
      %1085 = sbr.rel (0) target = $region71
    $region70: #{relax_model_forward.1} parent=1 // pred_region
      _
    $region71: #{relax_model_forward.1} parent=1 // pred_fallthru
      _
    %1086 = vsyncpa [#allocation3], 1
    %1087 = vsyncpa [#allocation5], 1

</llo_original>
